<compile_context>
chip_gen: v5e
topology: v5e:2x2
jax: 0.10.0
libtpu: 0.0.40
codegen_flags: <defaults>
</compile_context>

<pallas_src>
import functools

import jax
import jax.numpy as jnp
from jax.experimental import pallas as pl
from jax.experimental.pallas import tpu as pltpu

_LANE = 128            # TPU lane width (output last dim padded to a multiple of this)
_MXU = 256             # v6e/v7x MXU tile edge (multiple of v5e's 128 too)
_MIN_BATCH_TILE = 256  # batch tile quantum: multiple of 256 (MXU rows) and 8 (sublanes)


def _round_up(x, m):
    return -(-x // m) * m


def two_layer_mlp_kernel(x_ref, w1_ref, b1_ref, w2_ref, b2_ref, y_ref, acc_ref):
    """One (batch tile, H slab) step; acc_ref accumulates layer-2 partials in f32."""
    k = pl.program_id(1)

    @pl.when(k == 0)
    def _init():
        acc_ref[...] = jnp.zeros_like(acc_ref)

    # Layer 1 on this H slab: bf16 operands on the MXU, f32 accumulation;
    # bias-add + clamp(min=0) (ReLU) stay f32 on the VPU (v5e-safe).
    h = jnp.dot(x_ref[...], w1_ref[...], preferred_element_type=jnp.float32)
    h = jnp.maximum(h + b1_ref[...], 0.0)

    # Layer 2 partial contraction over this H slab (bf16 MXU feed, f32 accumulate).
    acc_ref[...] += jnp.dot(h.astype(jnp.bfloat16), w2_ref[...],
                            preferred_element_type=jnp.float32)

    @pl.when(k == pl.num_programs(1) - 1)
    def _finalize():
        y_ref[...] = (acc_ref[...] + b2_ref[...]).astype(y_ref.dtype)


def prepare_params(w1, b1, w2, b2):
    """One-time conversion from PyTorch nn.Linear layout to kernel layout.

    w1: [H, D_in], b1: [H], w2: [D_out, H], b2: [D_out]  (float32, PyTorch conventions).
    Zero padding of H / D_out is exact: zero weight columns + zero bias -> relu(0)=0 -> zero
    contribution, and padded output lanes are exactly 0 (do not replace with uninit buffers).
    """
    H, D_in = w1.shape
    D_out = w2.shape[0]
    d_out_pad = _round_up(D_out, _LANE)                      # lane-dense unmasked stores
    h_pad = _round_up(H, _MXU) if H > _LANE else _LANE       # keep MXU columns busy (v6e/v7x)

    w1t = jnp.zeros((D_in, h_pad), jnp.bfloat16)
    w1t = w1t.at[:, :H].set(jnp.transpose(w1).astype(jnp.bfloat16))
    b1_2d = jnp.zeros((1, h_pad), jnp.float32).at[:, :H].set(jnp.asarray(b1, jnp.float32))
    w2t = jnp.zeros((h_pad, d_out_pad), jnp.bfloat16)
    w2t = w2t.at[:H, :D_out].set(jnp.transpose(w2).astype(jnp.bfloat16))
    b2_2d = jnp.zeros((1, d_out_pad), jnp.float32).at[:, :D_out].set(
        jnp.asarray(b2, jnp.float32))
    return {"w1t": w1t, "b1": b1_2d, "w2t": w2t, "b2": b2_2d, "d_out": int(D_out)}


def _vmem_capacity_bytes():
    """Generation-aware VMEM capacity (trace-time query); conservative fallback = v7x 64 MiB."""
    try:
        cap = getattr(pltpu.get_tpu_info(), "vmem_capacity_bytes", None)
        if cap:
            return int(cap)
    except Exception:
        pass
    return 64 * 1024 * 1024


def _footprint_bytes(eff_tile, d_in, tile_h, d_out_pad, w_bufs, out_bytes):
    """Estimated VMEM footprint: resident weights + pipelined tiles + scratch + intermediates."""
    bf16, f32 = 2, 4
    weights = w_bufs * (d_in * tile_h * bf16          # w1t slab
                        + tile_h * f32                # b1 slab
                        + tile_h * d_out_pad * bf16)  # w2t slab
    weights += d_out_pad * f32                        # b2 (single-buffered, always resident)
    acts = (2 * eff_tile * d_in * bf16                # x tile, double-buffered
            + 2 * eff_tile * d_out_pad * out_bytes    # y tile, double-buffered
            + eff_tile * d_out_pad * f32              # f32 accumulator scratch
            + eff_tile * tile_h * (f32 + bf16))       # hidden intermediate (f32 + bf16 copy)
    return weights + acts


@functools.partial(jax.jit, static_argnames=("d_out", "tile_n", "out_dtype"))
def _apply(x, w1t, b1_2d, w2t, b2_2d, *, d_out, tile_n, out_dtype):
    N, D_in = x.shape
    h_pad = w1t.shape[1]
    d_out_pad = w2t.shape[1]
    out_bytes = jnp.dtype(out_dtype).itemsize

    # Stream x in bf16 (halves x HBM read traffic / vld pressure vs f32 + in-kernel cast).
    # Keep activations bf16 upstream to make this cast a no-op.
    x = x.astype(jnp.bfloat16)

    # --- batch tiling: ensure >=2 tiles whenever N allows so v7x's 2nd TC isn't idle ---
    if N <= _MIN_BATCH_TILE:
        eff_tile = N
    elif N <= tile_n:
        eff_tile = _round_up(-(-N // 2), _MIN_BATCH_TILE)
    else:
        eff_tile = tile_n
    n_tiles = pl.cdiv(N, eff_tile)

    # --- H tiling escape hatch: keep weights fully resident if they fit the VMEM budget,
    # otherwise stream H slabs along an "arbitrary" reduction axis with an f32 accumulator ---
    vmem_cap = _vmem_capacity_bytes()
    budget = int(0.70 * vmem_cap)
    tile_h = h_pad
    if _footprint_bytes(eff_tile, D_in, tile_h, d_out_pad, 1, out_bytes) > budget:
        while (_footprint_bytes(eff_tile, D_in, tile_h, d_out_pad, 2, out_bytes) > budget
               and tile_h % (2 * _LANE) == 0):   # keep slabs a multiple of 128 lanes
            tile_h //= 2
    h_tiles = h_pad // tile_h
    resident = (h_tiles == 1)

    w_bufs = 1 if resident else 2
    footprint = _footprint_bytes(eff_tile, D_in, tile_h, d_out_pad, w_bufs, out_bytes)
    vmem_limit = min(int(0.85 * vmem_cap), max(32 * 1024 * 1024, footprint + (8 << 20)))

    def _wspec(shape, index_map):
        # Constant-index weight blocks: single-buffer (no 2x double-buffer VMEM tax).
        if resident:
            return pl.BlockSpec(shape, index_map, pipeline_mode=pl.Buffered(1))
        return pl.BlockSpec(shape, index_map)   # streamed H slabs: default double-buffering

    flops = 2 * N * (D_in * h_pad + h_pad * d_out_pad)
    bytes_accessed = (N * D_in * 2                      # x (bf16)
                      + D_in * h_pad * 2 + h_pad * d_out_pad * 2   # weights (bf16)
                      + (h_pad + d_out_pad) * 4                     # biases (f32)
                      + N * d_out_pad * out_bytes)                  # output

    y_pad = pl.pallas_call(
        two_layer_mlp_kernel,
        out_shape=jax.ShapeDtypeStruct((N, d_out_pad), out_dtype),
        grid=(n_tiles, h_tiles),
        in_specs=[
            pl.BlockSpec((eff_tile, D_in), lambda i, k: (i, 0)),   # x tile (pipelined)
            _wspec((D_in, tile_h), lambda i, k: (0, k)),           # w1t slab
            _wspec((1, tile_h), lambda i, k: (0, k)),              # b1 slab
            _wspec((tile_h, d_out_pad), lambda i, k: (k, 0)),      # w2t slab
            pl.BlockSpec((1, d_out_pad), lambda i, k: (0, 0),
                         pipeline_mode=pl.Buffered(1)),            # b2 (always resident)
        ],
        out_specs=pl.BlockSpec((eff_tile, d_out_pad), lambda i, k: (i, 0)),
        scratch_shapes=[pltpu.VMEM((eff_tile, d_out_pad), jnp.float32)],
        compiler_params=pltpu.CompilerParams(
            dimension_semantics=("parallel", "arbitrary"),
            vmem_limit_bytes=vmem_limit,
        ),
        cost_estimate=pl.CostEstimate(flops=flops, transcendentals=0,
                                      bytes_accessed=bytes_accessed),
    )(x, w1t, b1_2d, w2t, b2_2d)

    if d_out_pad == d_out:
        return y_pad                 # lane-aligned D_out: no extra slice/copy pass
    return y_pad[:, :d_out]


def two_layer_net_apply(kparams, x, tile_n=512, out_dtype=jnp.float32):
    """Forward pass of TwoLayerNet given prepared kernel params.

    tile_n: batch tile upper bound (multiple of 256; sweep 256/512/1024 per generation).
    out_dtype: pass jnp.bfloat16 to halve output writeback if downstream tolerates it.
    """
    return _apply(x, kparams["w1t"], kparams["b1"], kparams["w2t"], kparams["b2"],
                  d_out=kparams["d_out"], tile_n=tile_n, out_dtype=out_dtype)


def _torch_linear_init(key, out_features, in_features):
    """Deterministic replica of torch.nn.Linear default init: U(-1/sqrt(in), 1/sqrt(in))."""
    kw, kb = jax.random.split(key)
    bound = 1.0 / jnp.sqrt(jnp.float32(in_features))
    w = jax.random.uniform(kw, (out_features, in_features), jnp.float32, -bound, bound)
    b = jax.random.uniform(kb, (out_features,), jnp.float32, -bound, bound)
    return w, b


if __name__ == "__main__":
    key = jax.random.PRNGKey(0)

    # --- Test 1: toy shapes consistent with the module spec (x is [N, D_in]) ---
    # TODO(synk): at these toy sizes the kernel is pure launch overhead vs a fused XLA MLP;
    # the Pallas path pays off only for scaled-up N/H.
    N, D_in, H, D_out = 8, 16, 32, 8
    kx, k1, k2, krest = jax.random.split(key, 4)
    x = jax.random.normal(kx, (N, D_in), jnp.float32)
    w1, b1 = _torch_linear_init(k1, H, D_in)      # linear1: D_in -> H
    w2, b2 = _torch_linear_init(k2, D_out, H)     # linear2: H -> D_out

    kparams = prepare_params(w1, b1, w2, b2)
    y = jax.block_until_ready(two_layer_net_apply(kparams, x))
    assert y.shape == (N, D_out)

    # (a) Tight check vs a pure-JAX reference using the SAME bf16 weights / f32 accumulation.
    x_bf = x.astype(jnp.bfloat16)
    h_bf = jnp.maximum(
        jnp.dot(x_bf, kparams["w1t"], preferred_element_type=jnp.float32) + kparams["b1"], 0.0)
    y_bf = (jnp.dot(h_bf.astype(jnp.bfloat16), kparams["w2t"],
                    preferred_element_type=jnp.float32) + kparams["b2"])[:, :D_out]
    assert jnp.allclose(y, y_bf, atol=2e-3, rtol=2e-3)

    # (b) Loose check vs the full-f32 PyTorch-semantics forward (bf16 quantization error).
    y32 = jnp.maximum(x @ w1.T + b1, 0.0) @ w2.T + b2
    assert jnp.allclose(y, y32, atol=5e-2, rtol=5e-2)

    # --- Test 2: multi-tile batch (grid > 1, masked last tile) + lane-aligned D_out (no slice) ---
    N2, D_in2, H2, D_out2 = 300, 128, 256, 128
    kx2, k4, k5 = jax.random.split(krest, 3)
    x2 = jax.random.normal(kx2, (N2, D_in2), jnp.float32)
    w1b, b1b = _torch_linear_init(k4, H2, D_in2)
    w2b, b2b = _torch_linear_init(k5, D_out2, H2)
    kp2 = prepare_params(w1b, b1b, w2b, b2b)
    y2 = jax.block_until_ready(two_layer_net_apply(kp2, x2))
    assert y2.shape == (N2, D_out2)
    y2_32 = jnp.maximum(x2 @ w1b.T + b1b, 0.0) @ w2b.T + b2b
    assert jnp.allclose(y2, y2_32, atol=8e-2, rtol=5e-2)

    print("KERNEL_OK")
</pallas_src>

<mosaic_0001>
module attributes {stable_mosaic.version = 11 : i64} {
  func.func @two_layer_mlp_kernel(%arg0: i32, %arg1: i32, %arg2: memref<8x16xbf16, #tpu.memory_space<vmem>>, %arg3: memref<16x128xbf16, #tpu.memory_space<vmem>>, %arg4: memref<1x128xf32, #tpu.memory_space<vmem>>, %arg5: memref<128x128xbf16, #tpu.memory_space<vmem>>, %arg6: memref<1x128xf32, #tpu.memory_space<vmem>>, %arg7: memref<8x128xf32, #tpu.memory_space<vmem>>, %arg8: memref<8x128xf32, #tpu.memory_space<vmem>>) attributes {dimension_semantics = [#tpu.dimension_semantics<parallel>, #tpu.dimension_semantics<arbitrary>], iteration_bounds = array<i64: 1, 1>, scalar_prefetch = 0 : i64, scratch_operands = 1 : i64, tpu.core_type = #tpu.core_type<tc>, window_params = [{transform_indices = @transform_0, window_bounds = array<i64: 8, 16>}, {pipeline_mode = #tpu.pipeline_mode<synchronous>, transform_indices = @transform_1, window_bounds = array<i64: 16, 128>}, {pipeline_mode = #tpu.pipeline_mode<synchronous>, transform_indices = @transform_2, window_bounds = array<i64: 1, 128>}, {pipeline_mode = #tpu.pipeline_mode<synchronous>, transform_indices = @transform_3, window_bounds = array<i64: 128, 128>}, {pipeline_mode = #tpu.pipeline_mode<synchronous>, transform_indices = @transform_4, window_bounds = array<i64: 1, 128>}, {transform_indices = @transform_5, window_bounds = array<i64: 8, 128>}]} {
    %c0_i32 = arith.constant 0 : i32
    %0 = arith.cmpi eq, %arg1, %c0_i32 : i32
    %1 = arith.extui %0 : i1 to i32
    %c0_i32_0 = arith.constant 0 : i32
    %2 = arith.cmpi ne, %1, %c0_i32_0 : i32
    scf.if %2 {
      %cst_16 = arith.constant 0.000000e+00 : f32
      %20 = vector.broadcast %cst_16 : f32 to vector<8x128xf32>
      %c0_17 = arith.constant 0 : index
      %c0_18 = arith.constant 0 : index
      %21 = vector.load %arg8[%c0_17, %c0_18] : memref<8x128xf32, #tpu.memory_space<vmem>>, vector<8x128xf32>
      tpu.vector_store %arg8[%c0_17, %c0_18], %20 {strides = array<i32>} : memref<8x128xf32, #tpu.memory_space<vmem>>, vector<8x128xf32>,
    } else {
    }
    %c0 = arith.constant 0 : index
    %c0_1 = arith.constant 0 : index
    %3 = vector.load %arg2[%c0, %c0_1] : memref<8x16xbf16, #tpu.memory_space<vmem>>, vector<8x16xbf16>
    %c0_2 = arith.constant 0 : index
    %c0_3 = arith.constant 0 : index
    %4 = vector.load %arg3[%c0_2, %c0_3] : memref<16x128xbf16, #tpu.memory_space<vmem>>, vector<16x128xbf16>
    %cst = arith.constant dense<0.000000e+00> : vector<8x128xf32>
    %5 = tpu.matmul %3, %4, %cst {dimension_numbers = #tpu.dot_dimension_numbers<[1], [0], [0], [1], [0, 0, 1, 1], [], []>} : vector<8x16xbf16>, vector<16x128xbf16>, vector<8x128xf32> -> vector<8x128xf32>
    %c0_4 = arith.constant 0 : index
    %c0_5 = arith.constant 0 : index
    %6 = vector.load %arg4[%c0_4, %c0_5] : memref<1x128xf32, #tpu.memory_space<vmem>>, vector<1x128xf32>
    %7 = vector.broadcast %6 : vector<1x128xf32> to vector<8x128xf32>
    %8 = arith.addf %5, %7 : vector<8x128xf32>
    %cst_6 = arith.constant 0.000000e+00 : f32
    %9 = vector.broadcast %cst_6 : f32 to vector<8x128xf32>
    %10 = arith.maximumf %8, %9 : vector<8x128xf32>
    %c0_7 = arith.constant 0 : index
    %c0_8 = arith.constant 0 : index
    %11 = vector.load %arg8[%c0_7, %c0_8] : memref<8x128xf32, #tpu.memory_space<vmem>>, vector<8x128xf32>
    %12 = arith.truncf %10 : vector<8x128xf32> to vector<8x128xbf16>
    %c0_9 = arith.constant 0 : index
    %c0_10 = arith.constant 0 : index
    %13 = vector.load %arg5[%c0_9, %c0_10] : memref<128x128xbf16, #tpu.memory_space<vmem>>, vector<128x128xbf16>
    %cst_11 = arith.constant dense<0.000000e+00> : vector<8x128xf32>
    %14 = tpu.matmul %12, %13, %cst_11 {dimension_numbers = #tpu.dot_dimension_numbers<[1], [0], [0], [1], [0, 0, 1, 1], [], []>} : vector<8x128xbf16>, vector<128x128xbf16>, vector<8x128xf32> -> vector<8x128xf32>
    %15 = arith.addf %11, %14 : vector<8x128xf32>
    %c0_12 = arith.constant 0 : index
    %c0_13 = arith.constant 0 : index
    %16 = vector.load %arg8[%c0_12, %c0_13] : memref<8x128xf32, #tpu.memory_space<vmem>>, vector<8x128xf32>
    tpu.vector_store %arg8[%c0_12, %c0_13], %15 {strides = array<i32>} : memref<8x128xf32, #tpu.memory_space<vmem>>, vector<8x128xf32>,
    %c0_i32_14 = arith.constant 0 : i32
    %17 = arith.cmpi eq, %arg1, %c0_i32_14 : i32
    %18 = arith.extui %17 : i1 to i32
    %c0_i32_15 = arith.constant 0 : i32
    %19 = arith.cmpi ne, %18, %c0_i32_15 : i32
    scf.if %19 {
      %c0_16 = arith.constant 0 : index
      %c0_17 = arith.constant 0 : index
      %20 = vector.load %arg8[%c0_16, %c0_17] : memref<8x128xf32, #tpu.memory_space<vmem>>, vector<8x128xf32>
      %c0_18 = arith.constant 0 : index
      %c0_19 = arith.constant 0 : index
      %21 = vector.load %arg6[%c0_18, %c0_19] : memref<1x128xf32, #tpu.memory_space<vmem>>, vector<1x128xf32>
      %22 = vector.broadcast %21 : vector<1x128xf32> to vector<8x128xf32>
      %23 = arith.addf %20, %22 : vector<8x128xf32>
      %c0_20 = arith.constant 0 : index
      %c0_21 = arith.constant 0 : index
      %24 = vector.load %arg7[%c0_20, %c0_21] : memref<8x128xf32, #tpu.memory_space<vmem>>, vector<8x128xf32>
      tpu.vector_store %arg7[%c0_20, %c0_21], %23 {strides = array<i32>} : memref<8x128xf32, #tpu.memory_space<vmem>>, vector<8x128xf32>,
    } else {
    }
    return
  }
  func.func @transform_0(%arg0: i32, %arg1: i32) -> (i32, i32) {
    %c0_i32 = arith.constant 0 : i32
    %c0_i32_0 = arith.constant 0 : i32
    return %arg0, %c0_i32 : i32, i32
  }
  func.func @transform_1(%arg0: i32, %arg1: i32) -> (i32, i32) {
    %c0_i32 = arith.constant 0 : i32
    %c0_i32_0 = arith.constant 0 : i32
    return %c0_i32, %arg1 : i32, i32
  }
  func.func @transform_2(%arg0: i32, %arg1: i32) -> (i32, i32) {
    %c0_i32 = arith.constant 0 : i32
    %c0_i32_0 = arith.constant 0 : i32
    return %c0_i32, %arg1 : i32, i32
  }
  func.func @transform_3(%arg0: i32, %arg1: i32) -> (i32, i32) {
    %c0_i32 = arith.constant 0 : i32
    %c0_i32_0 = arith.constant 0 : i32
    return %arg1, %c0_i32 : i32, i32
  }
  func.func @transform_4(%arg0: i32, %arg1: i32) -> (i32, i32) {
    %c0_i32 = arith.constant 0 : i32
    %c0_i32_0 = arith.constant 0 : i32
    %c0_i32_1 = arith.constant 0 : i32
    return %c0_i32, %c0_i32_0 : i32, i32
  }
  func.func @transform_5(%arg0: i32, %arg1: i32) -> (i32, i32) {
    %c0_i32 = arith.constant 0 : i32
    %c0_i32_0 = arith.constant 0 : i32
    return %arg0, %c0_i32 : i32, i32
  }
}

</mosaic_0001>

<llo_original>
// kernel: _apply.1
$region0: #{_apply.1}
  #allocation0 [shape = 'u32[]', space=smem, size = 0x4, offset = 0x4, fixed_abs, tag = 'smem constant byte address 0x4 - core index']
  #allocation1 [shape = 'u32[72,128]{1,0:T(1,128)}', space=vmem, size = 0x9000, scoped, tag = 'internal scratch']
  #allocation2 [shape = 'f32[8,128]{1,0:T(8,128)}', space=vmem, size = 0x1000, scoped, tag = 'scratch operand']
  %s0 = inlined_call_operand.vmem [shape: bf16[8,16], index: 0, kind: input, shape index: {}]
  %s1 = inlined_call_operand.vmem [shape: bf16[16,128], index: 1, kind: input, shape index: {}]
  %s2 = inlined_call_operand.vmem [shape: f32[1,128], index: 2, kind: input, shape index: {}]
  %s3 = inlined_call_operand.hbm [shape: bf16[128,128], index: 3, kind: input, shape index: {}]
  %s4 = inlined_call_operand.vmem [shape: f32[1,128], index: 4, kind: input, shape index: {}]
  %s5 = inlined_call_operand.hbm [shape: f32[8,128], index: 5, kind: output, shape index: {}]
  %s6 = sld [smem:[#allocation0]]
  $region42: #{_apply.1} parent=0
    _
  %s8 = ssub.s32 1, %s6
  %s9 = scalar_select 0, %s8, %s6
  $region1: #{_apply.1} parent=0
    #allocation3 [shape = 'u8[32768]{0}', space=vmem, size = 0x8000, scoped, tag = 'input window, operand 3, single buffered']
    #allocation4 [shape = 's32[1]{0}', space=sflag, size = 0x4, scoped, tag = 'scoped memory for _apply.1']
    #allocation5 [shape = 's32[1]{0}', space=sflag, size = 0x4, scoped, tag = 'scoped memory for _apply.1']
    #allocation6 [shape = 'u8[4096]{0}', space=vmem, size = 0x1000, scoped, tag = 'output window, operand 0, single buffered']
    %10 = vsyncpa [#allocation4], 0
    %11 = vsyncpa [#allocation5], 0
    // Predicated region
    $region2: #{_apply.1} parent=1 // pred_check
      _
    $region3: #{_apply.1} parent=1 // pred_check_branch
      %13 = sbr.rel (0) target = $region5
    $region4: #{_apply.1} parent=1 // pred_region
      _
    $region5: #{_apply.1} parent=1 // pred_fallthru
      _
    // Predicated region
    $region6: #{_apply.1} parent=1 // pred_check
      _
    $region7: #{_apply.1} parent=1 // pred_check_branch
      %15 = sbr.rel (0) target = $region9
    $region8: #{_apply.1} parent=1 // pred_region
      _
    $region9: #{_apply.1} parent=1 // pred_fallthru
      _
    // Predicated region
    $region10: #{_apply.1} parent=1 // pred_check
      _
    $region11: #{_apply.1} parent=1 // pred_check_branch
      %17 = sbr.rel (0) target = $region13
    $region12: #{_apply.1} parent=1 // pred_region
      _
    $region13: #{_apply.1} parent=1 // pred_fallthru
      _
    // Predicated region
    $region14: #{_apply.1} parent=1 // pred_check
      _
    $region15: #{_apply.1} parent=1 // pred_check_branch
      %19 = sbr.rel (0) target = $region17
    $region16: #{_apply.1} parent=1 // pred_region
      %21 = vsyncadd [#allocation4], 0
      %s22 = sshll.u32 %s3, 4
      %s23 = int_to_ptr.hbm [resolvable:$true] %s22
      %s24 = sshll.u32 [#allocation3], 4
      %s25 = int_to_ptr.vmem [resolvable:$true] %s24
      %30 = dma.hbm_to_vmem [thread:$0]  %s23, 1024, %s25, [#allocation4], 64, 64, 4
    $region17: #{_apply.1} parent=1 // pred_fallthru
      _
    // Predicated region
    $region18: #{_apply.1} parent=1 // pred_check
      _
    $region19: #{_apply.1} parent=1 // pred_check_branch
      %32 = sbr.rel (0) target = $region21
    $region20: #{_apply.1} parent=1 // pred_region
      _
    $region21: #{_apply.1} parent=1 // pred_fallthru
      _
    // Predicated region
    $region22: #{_apply.1} parent=1 // pred_check
      _
    $region23: #{_apply.1} parent=1 // pred_check_branch
      %34 = sbr.rel (0) target = $region25
    $region24: #{_apply.1} parent=1 // pred_region
      %36 = dma.done [#allocation4], 1024
    $region25: #{_apply.1} parent=1 // pred_fallthru
      _
    %p38 = scmp.eq.s32.totalorder 0, 0
    // Predicated region
    $region26: #{_apply.1} parent=1 // pred_check
      %p39 = pneg %p38
    $region27: #{_apply.1} parent=1 // pred_check_branch
      %41 = sbr.rel (%p39) target = $region29
    $region28: #{_apply.1} parent=1 // pred_region
      %42 = vst [vmem:[#allocation2] sm:$0xff] 0.0
    $region29: #{_apply.1} parent=1 // pred_fallthru
      _
    %v43 = vld [vmem:[%s0] sm:$0xf]
    %v44 = vld [vmem:[%s1] sm:$0xf]
    %v45 = vld [vmem:[%s1 + $0x4] sm:$0xf]
    %v46 = vld [vmem:[%s2] sm:$0x1]
    %v48 = vperm.slane %v46, 0
    %v52 = vunpack.c.l.b16 %v44
    %v53 = vunpack.c.l.b16 %v45
    %v54 = vpack.c.b16 %v53, %v52
    %vm56 = vcmask 130048
    %v58 = vsel %vm56, %v43, 0
    %60 = vmatpush.bf16.msra.mxu0 0
    %61 = vmatpush.bf16.msra.mxu0 0
    %62 = vmatpush.bf16.msra.mxu0 0
    %63 = vmatpush.bf16.msra.mxu0 0
    %64 = vmatpush.bf16.msra.mxu0 0
    %65 = vmatpush.bf16.msra.mxu0 0
    %66 = vmatpush.bf16.msra.mxu0 0
    %67 = vmatpush.bf16.msra.mxu0 %v54
    %68 = vmatmul.bf16.gmra.mxu0 %v58
    %v69 = vpop.f32.mrf.mxu0
    %v70 = vadd.f32 %v48, %v69
    %v71 = vpop.f32.mrf.mxu0
    %72 = vdwg.mxu0
    %v73 = vmax.f32 %v70, 0.0
    %v74 = vld [vmem:[#allocation2] sm:$0xff]
    %v75 = vpack.c.bf16 %v73, %v73
    %v76 = vld [vmem:[#allocation3] sm:$0xf]
    %v77 = vld [vmem:[#allocation3 + $0x4] sm:$0xf]
    %v78 = vld [vmem:[#allocation3 + $0x8] sm:$0xf]
    %v79 = vld [vmem:[#allocation3 + $0xc] sm:$0xf]
    %v80 = vld [vmem:[#allocation3 + $0x10] sm:$0xf]
    %v81 = vld [vmem:[#allocation3 + $0x14] sm:$0xf]
    %v82 = vld [vmem:[#allocation3 + $0x18] sm:$0xf]
    %v83 = vld [vmem:[#allocation3 + $0x1c] sm:$0xf]
    %v84 = vld [vmem:[#allocation3 + $0x20] sm:$0xf]
    %v85 = vld [vmem:[#allocation3 + $0x24] sm:$0xf]
    %v86 = vld [vmem:[#allocation3 + $0x28] sm:$0xf]
    %v87 = vld [vmem:[#allocation3 + $0x2c] sm:$0xf]
    %v88 = vld [vmem:[#allocation3 + $0x30] sm:$0xf]
    %v89 = vld [vmem:[#allocation3 + $0x34] sm:$0xf]
    %v90 = vld [vmem:[#allocation3 + $0x38] sm:$0xf]
    %v91 = vld [vmem:[#allocation3 + $0x3c] sm:$0xf]
    %v108 = vunpack.c.l.b16 %v76
    %v109 = vunpack.c.l.b16 %v77
    %v110 = vunpack.c.l.b16 %v78
    %v111 = vunpack.c.l.b16 %v79
    %v112 = vunpack.c.l.b16 %v80
    %v113 = vunpack.c.l.b16 %v81
    %v114 = vunpack.c.l.b16 %v82
    %v115 = vunpack.c.l.b16 %v83
    %v116 = vunpack.c.l.b16 %v84
    %v117 = vunpack.c.l.b16 %v85
    %v118 = vunpack.c.l.b16 %v86
    %v119 = vunpack.c.l.b16 %v87
    %v120 = vunpack.c.l.b16 %v88
    %v121 = vunpack.c.l.b16 %v89
    %v122 = vunpack.c.l.b16 %v90
    %v123 = vunpack.c.l.b16 %v91
    %v124 = vpack.c.b16 %v109, %v108
    %v125 = vpack.c.b16 %v111, %v110
    %v126 = vpack.c.b16 %v113, %v112
    %v127 = vpack.c.b16 %v115, %v114
    %v128 = vpack.c.b16 %v117, %v116
    %v129 = vpack.c.b16 %v119, %v118
    %v130 = vpack.c.b16 %v121, %v120
    %v131 = vpack.c.b16 %v123, %v122
    %140 = vmatpush.bf16.msra.mxu0 %v131
    %141 = vmatpush.bf16.msra.mxu0 %v130
    %142 = vmatpush.bf16.msra.mxu0 %v129
    %143 = vmatpush.bf16.msra.mxu0 %v128
    %144 = vmatpush.bf16.msra.mxu0 %v127
    %145 = vmatpush.bf16.msra.mxu0 %v126
    %146 = vmatpush.bf16.msra.mxu0 %v125
    %147 = vmatpush.bf16.msra.mxu0 %v124
    %148 = vmatmul.bf16.gmra.mxu0 %v75
    %v149 = vpop.f32.mrf.mxu0
    %v150 = vadd.f32 0.0, %v149
    %v151 = vpop.f32.mrf.mxu0
    %152 = vdwg.mxu0
    %v153 = vadd.f32 %v74, %v150
    %154 = vst [vmem:[#allocation2] sm:$0xff] %v153
    // Predicated region
    $region30: #{_apply.1} parent=1 // pred_check
      %p155 = pneg %p38
    $region31: #{_apply.1} parent=1 // pred_check_branch
      %157 = sbr.rel (%p155) target = $region33
    $region32: #{_apply.1} parent=1 // pred_region
      %v158 = vld [vmem:[#allocation2] sm:$0xff]
      %v159 = vld [vmem:[%s4] sm:$0x1]
      %v161 = vperm.slane %v159, 0
      %v163 = vadd.f32 %v158, %v161
      %164 = vst [vmem:[#allocation6] sm:$0xff] %v163
    $region33: #{_apply.1} parent=1 // pred_fallthru
      _
    // Predicated region
    $region34: #{_apply.1} parent=1 // pred_check
      _
    $region35: #{_apply.1} parent=1 // pred_check_branch
      %166 = sbr.rel (0) target = $region37
    $region36: #{_apply.1} parent=1 // pred_region
      %168 = vsyncadd [#allocation5], 0
      %s170 = sshll.u32 [#allocation6], 4
      %s171 = int_to_ptr.vmem [resolvable:$true] %s170
      %s172 = sshll.u32 %s5, 4
      %s173 = int_to_ptr.hbm [resolvable:$true] %s172
      %175 = dma.vmem_to_hbm [thread:$0]  %s171, 128, %s173, [#allocation5]
    $region37: #{_apply.1} parent=1 // pred_fallthru
      _
    // Predicated region
    $region38: #{_apply.1} parent=1 // pred_check
      _
    $region39: #{_apply.1} parent=1 // pred_check_branch
      %177 = sbr.rel (0) target = $region41
    $region40: #{_apply.1} parent=1 // pred_region
      %179 = dma.done [#allocation5], 128
    $region41: #{_apply.1} parent=1 // pred_fallthru
      _
    %180 = vsyncpa [#allocation4], 1
    %181 = vsyncpa [#allocation5], 1

</llo_original>
